<compile_context>
chip_gen: v5e
topology: v5e:2x2
jax: 0.10.0
libtpu: 0.0.40
codegen_flags: <defaults>
</compile_context>

<pallas_src>
import functools

import jax
import jax.numpy as jnp
from jax import lax
from jax.experimental import pallas as pl
from jax.experimental.pallas import tpu as pltpu


def _round_up(n, m):
    return ((n + m - 1) // m) * m


def _cdiv(a, b):
    return (a + b - 1) // b


def value_kernel(x_ref, w1_ref, b1_ref, w2_ref, b2_ref, w3_ref, b3_ref, o_ref,
                 *, chunk, ew_dtype):
    # x_ref: [bb, ni] f32 (natural layout)    w1_ref: [64, ni] bf16
    # w2_ref: [64, 64] bf16                   b1/b2/w3: [64, 1] f32
    # b3_ref: [1, 1] f32 (SMEM)               o_ref: [1, bb] f32
    n_chunks = x_ref.shape[0] // chunk

    b1 = b1_ref[...].astype(ew_dtype)            # [64, 1]
    b2 = b2_ref[...].astype(ew_dtype)            # [64, 1]
    w3 = w3_ref[...]                             # [64, 1] f32
    b3 = b3_ref[0, 0]                            # scalar f32

    def body(c, carry):
        start = pl.multiple_of(c * chunk, chunk)
        x_bf = x_ref[pl.ds(start, chunk), :].astype(jnp.bfloat16)      # [C, ni]

        # layer 1: contract last dims -> [64, C] (keeps activations feature-major)
        h1 = lax.dot_general(w1_ref[...], x_bf,
                             (((1,), (1,)), ((), ())),
                             preferred_element_type=jnp.float32)
        h1 = jnp.tanh(h1.astype(ew_dtype) + b1)                        # [64, C]

        # layer 2: [64, 64] @ [64, C] -> [64, C]
        h2 = jnp.dot(w2_ref[...], h1.astype(jnp.bfloat16),
                     preferred_element_type=jnp.float32)
        h2 = jnp.tanh(h2.astype(ew_dtype) + b2)                        # [64, C]

        # value head (N=1): VPU multiply + sublane reduction, f32 math.
        v = jnp.sum(h2.astype(jnp.float32) * w3, axis=0, keepdims=True)  # [1, C]
        o_ref[:, pl.ds(start, chunk)] = v + b3                         # lane-dense store
        return carry

    lax.fori_loop(0, n_chunks, body, None, unroll=True)


def value_forward(x, params, block_b=8192):
    """x: [B, num_inputs] float32 -> [B, 1] float32 (same semantics as torch Value)."""
    kind = jax.devices()[0].device_kind.lower()
    # v5 chips have no bf16 VPU/EUP; keep elementwise math f32 there, bf16 elsewhere.
    ew_dtype = jnp.float32 if "v5" in kind else jnp.bfloat16
    return _value_forward(x, params, block_b, ew_dtype)


@functools.partial(jax.jit, static_argnames=("block_b", "ew_dtype"))
def _value_forward(x, params, block_b, ew_dtype):
    w1, b1, w2, b2, w3, b3 = params          # PyTorch layout: weight [out, in]
    B, num_inputs = x.shape
    hidden = w1.shape[0]

    # Batch tile: as big as block_b allows (amortizes per-step overhead), multiple
    # of 128, but split so the grid keeps >=2 blocks when B allows (v7x megacore).
    bb = max(128, min(block_b, _round_up(B, 128)))
    if _cdiv(B, bb) < 2 and B > 128:
        bb = _round_up(_cdiv(B, 2), 128)
    num_blocks = _cdiv(B, bb)
    B_pad = num_blocks * bb
    # Inner chunk keeps live f32/bf16 intermediates at <=32 vregs (no spills).
    chunk = 512 if bb % 512 == 0 else (256 if bb % 256 == 0 else 128)

    if B_pad != B:                            # row pad only when needed (no transpose pass)
        x = jnp.pad(x, ((0, B_pad - B), (0, 0)))

    # MXU operands in bf16 (weights are tiny); bias / head columns in f32.
    w1_bf = w1.astype(jnp.bfloat16)                     # [64, ni]
    w2_bf = w2.astype(jnp.bfloat16)                     # [64, 64]
    b1_c = b1.reshape(hidden, 1).astype(jnp.float32)
    b2_c = b2.reshape(hidden, 1).astype(jnp.float32)
    w3_c = w3.reshape(hidden, 1).astype(jnp.float32)    # value-head column (VPU path)
    b3_s = b3.reshape(1, 1).astype(jnp.float32)

    const = lambda shape: pl.BlockSpec(shape, lambda i: (0, 0))   # resident operand
    grid_spec = pltpu.PrefetchScalarGridSpec(
        num_scalar_prefetch=0,
        grid=(num_blocks,),
        in_specs=[
            pl.BlockSpec((bb, num_inputs), lambda i: (i, 0)),     # x tile (pipelined)
            const((hidden, num_inputs)),                          # w1
            const((hidden, 1)),                                   # b1
            const((hidden, hidden)),                              # w2
            const((hidden, 1)),                                   # b2
            const((hidden, 1)),                                   # w3
            pl.BlockSpec(memory_space=pltpu.MemorySpace.SMEM),    # b3 scalar
        ],
        out_specs=pl.BlockSpec((1, bb), lambda i: (0, i)),        # lane-dense row
    )

    cost = pl.CostEstimate(
        flops=2 * B_pad * (num_inputs * hidden + hidden * hidden + hidden),
        transcendentals=2 * hidden * B_pad,
        bytes_accessed=(B_pad * num_inputs * 4 + B_pad * 4
                        + (num_inputs * hidden + hidden * hidden) * 2
                        + 3 * hidden * 4 + 4),
    )

    out_row = pl.pallas_call(
        functools.partial(value_kernel, chunk=chunk, ew_dtype=ew_dtype),
        out_shape=jax.ShapeDtypeStruct((1, B_pad), jnp.float32),
        grid_spec=grid_spec,
        compiler_params=pltpu.CompilerParams(
            dimension_semantics=("parallel",),                    # megacore on v7x
        ),
        cost_estimate=cost,
    )(x, w1_bf, b1_c, w2_bf, b2_c, w3_c, b3_s)

    return out_row[0, :B].reshape(B, 1)


def init_params(key, num_inputs, hidden=64):
    """PyTorch nn.Linear default init, weights kept in PyTorch [out, in] layout."""
    ks = jax.random.split(key, 6)

    def linear_init(kw, kb, fan_in, fan_out):
        bound = 1.0 / (fan_in ** 0.5)
        w = jax.random.uniform(kw, (fan_out, fan_in), jnp.float32, -bound, bound)
        b = jax.random.uniform(kb, (fan_out,), jnp.float32, -bound, bound)
        return w, b

    w1, b1 = linear_init(ks[0], ks[1], num_inputs, hidden)
    w2, b2 = linear_init(ks[2], ks[3], hidden, hidden)
    w3, b3 = linear_init(ks[4], ks[5], hidden, 1)
    # value_head.weight.data.mul_(0.1); value_head.bias.data.mul_(0.0)
    w3 = w3 * 0.1
    b3 = b3 * 0.0
    return (w1, b1, w2, b2, w3, b3)


def value_reference(x, params):
    w1, b1, w2, b2, w3, b3 = params
    h1 = jnp.tanh(x @ w1.T + b1)
    h2 = jnp.tanh(h1 @ w2.T + b2)
    return h2 @ w3.T + b3


if __name__ == "__main__":
    key = jax.random.PRNGKey(0)
    k_x, k_p = jax.random.split(key)

    B, num_inputs = 200, 32          # non-multiple batch exercises padding + 2 grid blocks
    x = jax.random.normal(k_x, (B, num_inputs), jnp.float32)
    params = init_params(k_p, num_inputs)

    out = value_forward(x, params)
    out = jax.block_until_ready(out)

    ref = value_reference(x, params)
    assert out.shape == (B, 1)
    # bf16 MXU operands (+ bf16 tanh on v6e/v7x) with f32 accumulation -> relaxed tolerance.
    err = float(jnp.max(jnp.abs(out - ref)))
    assert jnp.allclose(out, ref, atol=1e-2, rtol=2e-2), err

    print("KERNEL_OK")
</pallas_src>

<mosaic_0001>
module attributes {stable_mosaic.version = 11 : i64} {
  func.func @value_kernel(%arg0: i32, %arg1: memref<128x32xf32, #tpu.memory_space<vmem>>, %arg2: memref<64x32xbf16, #tpu.memory_space<vmem>>, %arg3: memref<64x1xf32, #tpu.memory_space<vmem>>, %arg4: memref<64x64xbf16, #tpu.memory_space<vmem>>, %arg5: memref<64x1xf32, #tpu.memory_space<vmem>>, %arg6: memref<64x1xf32, #tpu.memory_space<vmem>>, %arg7: memref<1x1xf32, #tpu.memory_space<smem>>, %arg8: memref<1x128xf32, #tpu.memory_space<vmem>>) attributes {dimension_semantics = [#tpu.dimension_semantics<parallel>], iteration_bounds = array<i64: 2>, scalar_prefetch = 0 : i64, scratch_operands = 0 : i64, tpu.core_type = #tpu.core_type<tc>, window_params = [{transform_indices = @transform_0, window_bounds = array<i64: 128, 32>}, {pipeline_mode = #tpu.pipeline_mode<synchronous>, transform_indices = @transform_1, window_bounds = array<i64: 64, 32>}, {pipeline_mode = #tpu.pipeline_mode<synchronous>, transform_indices = @transform_2, window_bounds = array<i64: 64, 1>}, {pipeline_mode = #tpu.pipeline_mode<synchronous>, transform_indices = @transform_3, window_bounds = array<i64: 64, 64>}, {pipeline_mode = #tpu.pipeline_mode<synchronous>, transform_indices = @transform_4, window_bounds = array<i64: 64, 1>}, {pipeline_mode = #tpu.pipeline_mode<synchronous>, transform_indices = @transform_5, window_bounds = array<i64: 64, 1>}, {transform_indices = @transform_6, window_bounds = array<i64: 1, 1>}, {transform_indices = @transform_7, window_bounds = array<i64: 1, 128>}]} {
    %c0 = arith.constant 0 : index
    %c0_0 = arith.constant 0 : index
    %0 = vector.load %arg3[%c0, %c0_0] : memref<64x1xf32, #tpu.memory_space<vmem>>, vector<64x1xf32>
    %1 = arith.truncf %0 : vector<64x1xf32> to vector<64x1xbf16>
    %c0_1 = arith.constant 0 : index
    %c0_2 = arith.constant 0 : index
    %2 = vector.load %arg5[%c0_1, %c0_2] : memref<64x1xf32, #tpu.memory_space<vmem>>, vector<64x1xf32>
    %3 = arith.truncf %2 : vector<64x1xf32> to vector<64x1xbf16>
    %c0_3 = arith.constant 0 : index
    %c0_4 = arith.constant 0 : index
    %4 = vector.load %arg6[%c0_3, %c0_4] : memref<64x1xf32, #tpu.memory_space<vmem>>, vector<64x1xf32>
    %c0_5 = arith.constant 0 : index
    %c0_6 = arith.constant 0 : index
    %5 = memref.load %arg7[%c0_5, %c0_6] : memref<1x1xf32, #tpu.memory_space<smem>>
    %c0_i32 = arith.constant 0 : i32
    %c128_i32 = arith.constant 128 : i32
    %6 = arith.muli %c0_i32, %c128_i32 : i32
    %7 = tpu.assume_multiple %6, 128 : i32
    %8 = arith.index_cast %7 : i32 to index
    %c0_7 = arith.constant 0 : index
    %9 = vector.load %arg1[%8, %c0_7] : memref<128x32xf32, #tpu.memory_space<vmem>>, vector<128x32xf32>
    %10 = arith.truncf %9 : vector<128x32xf32> to vector<128x32xbf16>
    %c0_8 = arith.constant 0 : index
    %c0_9 = arith.constant 0 : index
    %11 = vector.load %arg2[%c0_8, %c0_9] : memref<64x32xbf16, #tpu.memory_space<vmem>>, vector<64x32xbf16>
    %cst = arith.constant dense<0.000000e+00> : vector<64x128xf32>
    %12 = tpu.matmul %11, %10, %cst {dimension_numbers = #tpu.dot_dimension_numbers<[1], [1], [0], [0], [0, 0, 1, 0], [], []>} : vector<64x32xbf16>, vector<128x32xbf16>, vector<64x128xf32> -> vector<64x128xf32>
    %13 = arith.truncf %12 : vector<64x128xf32> to vector<64x128xbf16>
    %14 = vector.broadcast %1 : vector<64x1xbf16> to vector<64x128xbf16>
    %15 = arith.addf %13, %14 : vector<64x128xbf16>
    %16 = math.tanh %15 : vector<64x128xbf16>
    %c0_10 = arith.constant 0 : index
    %c0_11 = arith.constant 0 : index
    %17 = vector.load %arg4[%c0_10, %c0_11] : memref<64x64xbf16, #tpu.memory_space<vmem>>, vector<64x64xbf16>
    %cst_12 = arith.constant dense<0.000000e+00> : vector<64x128xf32>
    %18 = tpu.matmul %17, %16, %cst_12 {dimension_numbers = #tpu.dot_dimension_numbers<[1], [0], [0], [1], [0, 0, 1, 1], [], []>} : vector<64x64xbf16>, vector<64x128xbf16>, vector<64x128xf32> -> vector<64x128xf32>
    %19 = arith.truncf %18 : vector<64x128xf32> to vector<64x128xbf16>
    %20 = vector.broadcast %3 : vector<64x1xbf16> to vector<64x128xbf16>
    %21 = arith.addf %19, %20 : vector<64x128xbf16>
    %22 = math.tanh %21 : vector<64x128xbf16>
    %23 = arith.extf %22 : vector<64x128xbf16> to vector<64x128xf32>
    %24 = vector.broadcast %4 : vector<64x1xf32> to vector<64x128xf32>
    %25 = arith.mulf %23, %24 : vector<64x128xf32>
    %cst_13 = arith.constant dense<0.000000e+00> : vector<128xf32>
    %26 = vector.multi_reduction <add>, %25, %cst_13 [0] : vector<64x128xf32> to vector<128xf32>
    %27 = vector.shape_cast %26 : vector<128xf32> to vector<1x128xf32>
    %28 = vector.broadcast %5 : f32 to vector<1x128xf32>
    %29 = arith.addf %27, %28 : vector<1x128xf32>
    %c0_14 = arith.constant 0 : index
    %30 = arith.index_cast %7 : i32 to index
    %31 = vector.load %arg8[%c0_14, %30] : memref<1x128xf32, #tpu.memory_space<vmem>>, vector<1x128xf32>
    tpu.vector_store %arg8[%c0_14, %30], %29 {strides = array<i32>} : memref<1x128xf32, #tpu.memory_space<vmem>>, vector<1x128xf32>,
    %c1_i32 = arith.constant 1 : i32
    return
  }
  func.func @transform_0(%arg0: i32) -> (i32, i32) {
    %c0_i32 = arith.constant 0 : i32
    %c0_i32_0 = arith.constant 0 : i32
    return %arg0, %c0_i32 : i32, i32
  }
  func.func @transform_1(%arg0: i32) -> (i32, i32) {
    %c0_i32 = arith.constant 0 : i32
    %c0_i32_0 = arith.constant 0 : i32
    %c0_i32_1 = arith.constant 0 : i32
    return %c0_i32, %c0_i32_0 : i32, i32
  }
  func.func @transform_2(%arg0: i32) -> (i32, i32) {
    %c0_i32 = arith.constant 0 : i32
    %c0_i32_0 = arith.constant 0 : i32
    %c0_i32_1 = arith.constant 0 : i32
    return %c0_i32, %c0_i32_0 : i32, i32
  }
  func.func @transform_3(%arg0: i32) -> (i32, i32) {
    %c0_i32 = arith.constant 0 : i32
    %c0_i32_0 = arith.constant 0 : i32
    %c0_i32_1 = arith.constant 0 : i32
    return %c0_i32, %c0_i32_0 : i32, i32
  }
  func.func @transform_4(%arg0: i32) -> (i32, i32) {
    %c0_i32 = arith.constant 0 : i32
    %c0_i32_0 = arith.constant 0 : i32
    %c0_i32_1 = arith.constant 0 : i32
    return %c0_i32, %c0_i32_0 : i32, i32
  }
  func.func @transform_5(%arg0: i32) -> (i32, i32) {
    %c0_i32 = arith.constant 0 : i32
    %c0_i32_0 = arith.constant 0 : i32
    %c0_i32_1 = arith.constant 0 : i32
    return %c0_i32, %c0_i32_0 : i32, i32
  }
  func.func @transform_6(%arg0: i32) -> (i32, i32) {
    %c0_i32 = arith.constant 0 : i32
    %c0_i32_0 = arith.constant 0 : i32
    %c0_i32_1 = arith.constant 0 : i32
    return %c0_i32, %c0_i32_0 : i32, i32
  }
  func.func @transform_7(%arg0: i32) -> (i32, i32) {
    %c0_i32 = arith.constant 0 : i32
    %c0_i32_0 = arith.constant 0 : i32
    return %c0_i32, %arg0 : i32, i32
  }
}

</mosaic_0001>

<llo_original>
// kernel: _value_forward.1
$region0: #{_value_forward.1}
  #allocation0 [shape = 'u32[]', space=smem, size = 0x4, offset = 0x4, fixed_abs, tag = 'smem constant byte address 0x4 - core index']
  #allocation1 [shape = 'u32[72,128]{1,0:T(1,128)}', space=vmem, size = 0x9000, scoped, tag = 'internal scratch']
  #allocation2 [shape = 'f32[1,1]{1,0:T(1,128)S(6)}', space=smem, size = 0x200, scoped, tag = 'scoped memory for _value_forward.1']
  %s0 = inlined_call_operand.vmem [shape: f32[256,32], index: 0, kind: input, shape index: {}]
  %s1 = inlined_call_operand.vmem [shape: bf16[64,32], index: 1, kind: input, shape index: {}]
  %s2 = inlined_call_operand.vmem [shape: f32[64,1], index: 2, kind: input, shape index: {}]
  %s3 = inlined_call_operand.vmem [shape: bf16[64,64], index: 3, kind: input, shape index: {}]
  %s4 = inlined_call_operand.vmem [shape: f32[64,1], index: 4, kind: input, shape index: {}]
  %s5 = inlined_call_operand.vmem [shape: f32[64,1], index: 5, kind: input, shape index: {}]
  %s6 = inlined_call_operand.<no memory space> [shape: f32[1,1], index: 6, kind: input, shape index: {}]
  %s7 = inlined_call_operand.vmem [shape: f32[1,256], index: 7, kind: output, shape index: {}]
  %s8 = sld [smem:[#allocation0]]
  $region61: #{_value_forward.1} parent=0
    _
  %s10 = ssub.s32 1, %s8
  %s11 = scalar_select 0, %s10, %s8
  %12 = sst [smem:[#allocation2]] %s6
  loop: start=0, step=1, limit=4
  $region2: #{_value_forward.1} parent=0 // loop_pre_header
    _
  $region3: #{_value_forward.1} parent=0 // loop_header
    %s14 = sphi 0, %s18
    %p15 = scmp.ge.s32.totalorder %s14, 4
    %s24 = sphi 0, %s26
    %s27 = sphi 0, %s24
    %s28 = sphi 0, %s27
    %s44 = sphi 0, %s28
    %s48 = sphi 0, %s48
    %s50 = sphi 0, %s48
    %s51 = sphi 0, %s50
    %s65 = sphi 0, %s51
    %s69 = sphi 0, %s69
    %s71 = sphi 0, %s69
    %s72 = sphi 0, %s71
    %s86 = sphi 0, %s72
    %s90 = sphi 0, %s90
    %s92 = sphi 0, %s90
    %s93 = sphi 0, %s92
    %s107 = sphi 0, %s93
    %s111 = sphi 0, %s111
    %s113 = sphi 0, %s111
    %s114 = sphi 0, %s113
    %s128 = sphi 0, %s114
    %s132 = sphi 0, %s132
    %s134 = sphi 0, %s132
    %s135 = sphi 0, %s134
    %s149 = sphi 0, %s135
    %s153 = sphi 0, %s153
    %s155 = sphi 0, %s153
    %s156 = sphi 0, %s155
    %s170 = sphi 0, %s156
    %s176 = sphi 0, %s178
    %s179 = sphi 0, %s176
    %s180 = sphi 0, %s179
    %s196 = sphi 0, %s180
  $region4: #{_value_forward.1} parent=0 // loop_header_branch
    %17 = sbr.rel (%p15) target = $region8
  $region5: #{_value_forward.1} parent=0 // loop_body
    %s19 = ssub.s32 %s14, 1
    %s20 = ssub.s32 %s14, 2
    %s21 = sadd.s32 %s14, 1
    %s22 = ssub.s32 %s14, %s21
    %p23 = scmp.eq.s32.totalorder %s22, 0
    %s25 = sadd.s32 %s24, 1
    %s26 = scalar_select %p23, %s24, %s25
    %p29 = pneg %p23
    %p30 = scmp.eq.s32.totalorder %s14, 1
    %p31 = por %p29, %p30
    %p32 = scmp.ne.s32.totalorder %s24, %s27
    %p33 = scmp.eq.s32.totalorder %s14, 0
    %p34 = por %p32, %p33
    %p35 = scmp.ne.s32.totalorder %s24, %s27
    %p36 = scmp.eq.s32.totalorder %s19, 1
    %p37 = por %p35, %p36
    %p38 = scmp.ne.s32.totalorder %s27, %s28
    %p39 = scmp.eq.s32.totalorder %s19, 0
    %p40 = por %p38, %p39
    %p41 = scmp.ne.s32.totalorder %s27, %s28
    %p42 = scmp.eq.s32.totalorder %s20, 1
    %p43 = por %p41, %p42
    %p45 = scmp.ne.s32.totalorder %s28, %s44
    %p46 = scmp.eq.s32.totalorder %s20, 0
    %p47 = por %p45, %p46
    %s49 = sadd.s32 %s48, 1
    %p52 = scmp.eq.s32.totalorder %s14, 1
    %p53 = scmp.ne.s32.totalorder %s48, %s50
    %p54 = scmp.eq.s32.totalorder %s14, 0
    %p55 = por %p53, %p54
    %p56 = scmp.ne.s32.totalorder %s48, %s50
    %p57 = scmp.eq.s32.totalorder %s19, 1
    %p58 = por %p56, %p57
    %p59 = scmp.ne.s32.totalorder %s50, %s51
    %p60 = scmp.eq.s32.totalorder %s19, 0
    %p61 = por %p59, %p60
    %p62 = scmp.ne.s32.totalorder %s50, %s51
    %p63 = scmp.eq.s32.totalorder %s20, 1
    %p64 = por %p62, %p63
    %p66 = scmp.ne.s32.totalorder %s51, %s65
    %p67 = scmp.eq.s32.totalorder %s20, 0
    %p68 = por %p66, %p67
    %s70 = sadd.s32 %s69, 1
    %p73 = scmp.eq.s32.totalorder %s14, 1
    %p74 = scmp.ne.s32.totalorder %s69, %s71
    %p75 = scmp.eq.s32.totalorder %s14, 0
    %p76 = por %p74, %p75
    %p77 = scmp.ne.s32.totalorder %s69, %s71
    %p78 = scmp.eq.s32.totalorder %s19, 1
    %p79 = por %p77, %p78
    %p80 = scmp.ne.s32.totalorder %s71, %s72
    %p81 = scmp.eq.s32.totalorder %s19, 0
    %p82 = por %p80, %p81
    %p83 = scmp.ne.s32.totalorder %s71, %s72
    %p84 = scmp.eq.s32.totalorder %s20, 1
    %p85 = por %p83, %p84
    %p87 = scmp.ne.s32.totalorder %s72, %s86
    %p88 = scmp.eq.s32.totalorder %s20, 0
    %p89 = por %p87, %p88
    %s91 = sadd.s32 %s90, 1
    %p94 = scmp.eq.s32.totalorder %s14, 1
    %p95 = scmp.ne.s32.totalorder %s90, %s92
    %p96 = scmp.eq.s32.totalorder %s14, 0
    %p97 = por %p95, %p96
    %p98 = scmp.ne.s32.totalorder %s90, %s92
    %p99 = scmp.eq.s32.totalorder %s19, 1
    %p100 = por %p98, %p99
    %p101 = scmp.ne.s32.totalorder %s92, %s93
    %p102 = scmp.eq.s32.totalorder %s19, 0
    %p103 = por %p101, %p102
    %p104 = scmp.ne.s32.totalorder %s92, %s93
    %p105 = scmp.eq.s32.totalorder %s20, 1
    %p106 = por %p104, %p105
    %p108 = scmp.ne.s32.totalorder %s93, %s107
    %p109 = scmp.eq.s32.totalorder %s20, 0
    %p110 = por %p108, %p109
    %s112 = sadd.s32 %s111, 1
    %p115 = scmp.eq.s32.totalorder %s14, 1
    %p116 = scmp.ne.s32.totalorder %s111, %s113
    %p117 = scmp.eq.s32.totalorder %s14, 0
    %p118 = por %p116, %p117
    %p119 = scmp.ne.s32.totalorder %s111, %s113
    %p120 = scmp.eq.s32.totalorder %s19, 1
    %p121 = por %p119, %p120
    %p122 = scmp.ne.s32.totalorder %s113, %s114
    %p123 = scmp.eq.s32.totalorder %s19, 0
    %p124 = por %p122, %p123
    %p125 = scmp.ne.s32.totalorder %s113, %s114
    %p126 = scmp.eq.s32.totalorder %s20, 1
    %p127 = por %p125, %p126
    %p129 = scmp.ne.s32.totalorder %s114, %s128
    %p130 = scmp.eq.s32.totalorder %s20, 0
    %p131 = por %p129, %p130
    %s133 = sadd.s32 %s132, 1
    %p136 = scmp.eq.s32.totalorder %s14, 1
    %p137 = scmp.ne.s32.totalorder %s132, %s134
    %p138 = scmp.eq.s32.totalorder %s14, 0
    %p139 = por %p137, %p138
    %p140 = scmp.ne.s32.totalorder %s132, %s134
    %p141 = scmp.eq.s32.totalorder %s19, 1
    %p142 = por %p140, %p141
    %p143 = scmp.ne.s32.totalorder %s134, %s135
    %p144 = scmp.eq.s32.totalorder %s19, 0
    %p145 = por %p143, %p144
    %p146 = scmp.ne.s32.totalorder %s134, %s135
    %p147 = scmp.eq.s32.totalorder %s20, 1
    %p148 = por %p146, %p147
    %p150 = scmp.ne.s32.totalorder %s135, %s149
    %p151 = scmp.eq.s32.totalorder %s20, 0
    %p152 = por %p150, %p151
    %s154 = sadd.s32 %s153, 1
    %p157 = scmp.eq.s32.totalorder %s14, 1
    %p158 = scmp.ne.s32.totalorder %s153, %s155
    %p159 = scmp.eq.s32.totalorder %s14, 0
    %p160 = por %p158, %p159
    %p161 = scmp.ne.s32.totalorder %s153, %s155
    %p162 = scmp.eq.s32.totalorder %s19, 1
    %p163 = por %p161, %p162
    %p164 = scmp.ne.s32.totalorder %s155, %s156
    %p165 = scmp.eq.s32.totalorder %s19, 0
    %p166 = por %p164, %p165
    %p167 = scmp.ne.s32.totalorder %s155, %s156
    %p168 = scmp.eq.s32.totalorder %s20, 1
    %p169 = por %p167, %p168
    %p171 = scmp.ne.s32.totalorder %s156, %s170
    %p172 = scmp.eq.s32.totalorder %s20, 0
    %p173 = por %p171, %p172
    %s174 = ssub.s32 %s14, %s21
    %p175 = scmp.eq.s32.totalorder %s174, 0
    %s177 = sadd.s32 %s176, 1
    %s178 = scalar_select %p175, %s176, %s177
    %p181 = pneg %p175
    %p182 = scmp.eq.s32.totalorder %s14, 1
    %p183 = por %p181, %p182
    %p184 = scmp.ne.s32.totalorder %s176, %s179
    %p185 = scmp.eq.s32.totalorder %s14, 0
    %p186 = por %p184, %p185
    %p187 = scmp.ne.s32.totalorder %s176, %s179
    %p188 = scmp.eq.s32.totalorder %s19, 1
    %p189 = por %p187, %p188
    %p190 = scmp.ne.s32.totalorder %s179, %s180
    %p191 = scmp.eq.s32.totalorder %s19, 0
    %p192 = por %p190, %p191
    %p193 = scmp.ne.s32.totalorder %s179, %s180
    %p194 = scmp.eq.s32.totalorder %s20, 1
    %p195 = por %p193, %p194
    %p197 = scmp.ne.s32.totalorder %s180, %s196
    %p198 = scmp.eq.s32.totalorder %s20, 0
    %p199 = por %p197, %p198
    %p200 = scmp.le.s32.totalorder 1, %s14
    %p201 = scmp.lt.s32.totalorder %s14, 3
    %p202 = pnand %p200, %p201
    %p203 = pneg %p202
    // Predicated region
    $region9: #{_value_forward.1} parent=5 // pred_check
      _
    $region10: #{_value_forward.1} parent=5 // pred_check_branch
      %205 = sbr.rel (%p202) target = $region12
    $region11: #{_value_forward.1} parent=5 // pred_region
      %s206 = ssub.s32 %s14, 1
      // Predicated region
      $region13: #{_value_forward.1} parent=11 // pred_check
        %p207 = pneg %p61
      $region14: #{_value_forward.1} parent=11 // pred_check_branch
        %209 = sbr.rel (%p207) target = $region16
      $region15: #{_value_forward.1} parent=11 // pred_region
        _
      $region16: #{_value_forward.1} parent=11 // pred_fallthru
        _
      // Predicated region
      $region17: #{_value_forward.1} parent=11 // pred_check
        %p210 = pneg %p82
      $region18: #{_value_forward.1} parent=11 // pred_check_branch
        %212 = sbr.rel (%p210) target = $region20
      $region19: #{_value_forward.1} parent=11 // pred_region
        _
      $region20: #{_value_forward.1} parent=11 // pred_fallthru
        _
      // Predicated region
      $region21: #{_value_forward.1} parent=11 // pred_check
        %p213 = pneg %p103
      $region22: #{_value_forward.1} parent=11 // pred_check_branch
        %215 = sbr.rel (%p213) target = $region24
      $region23: #{_value_forward.1} parent=11 // pred_region
        _
      $region24: #{_value_forward.1} parent=11 // pred_fallthru
        _
      // Predicated region
      $region25: #{_value_forward.1} parent=11 // pred_check
        %p216 = pneg %p124
      $region26: #{_value_forward.1} parent=11 // pred_check_branch
        %218 = sbr.rel (%p216) target = $region28
      $region27: #{_value_forward.1} parent=11 // pred_region
        _
      $region28: #{_value_forward.1} parent=11 // pred_fallthru
        _
      // Predicated region
      $region29: #{_value_forward.1} parent=11 // pred_check
        %p219 = pneg %p145
      $region30: #{_value_forward.1} parent=11 // pred_check_branch
        %221 = sbr.rel (%p219) target = $region32
      $region31: #{_value_forward.1} parent=11 // pred_region
        _
      $region32: #{_value_forward.1} parent=11 // pred_fallthru
        _
      // Predicated region
      $region33: #{_value_forward.1} parent=11 // pred_check
        %p222 = pneg %p166
      $region34: #{_value_forward.1} parent=11 // pred_check_branch
        %224 = sbr.rel (%p222) target = $region36
      $region35: #{_value_forward.1} parent=11 // pred_region
        _
      $region36: #{_value_forward.1} parent=11 // pred_fallthru
        _
    $region12: #{_value_forward.1} parent=5 // pred_fallthru
      _
    %p225 = scmp.lt.s32.totalorder %s14, 2
    // Predicated region
    $region37: #{_value_forward.1} parent=5 // pred_check
      %p226 = pneg %p225
    $region38: #{_value_forward.1} parent=5 // pred_check_branch
      %228 = sbr.rel (%p226) target = $region40
    $region39: #{_value_forward.1} parent=5 // pred_region
      // Predicated region
      $region41: #{_value_forward.1} parent=39 // pred_check
        %p229 = pneg %p34
      $region42: #{_value_forward.1} parent=39 // pred_check_branch
        %231 = sbr.rel (%p229) target = $region44
      $region43: #{_value_forward.1} parent=39 // pred_region
        %s232 = smul.u32 16, %s14
        %p233 = scmp.lt.s32.totalorder %s232, 31
        %s234 = scalar_select %p233, %s232, 31
        %s235 = smul.addr %s234, 8
        %s236 = scalar_lea.vmem %s0, %s235
        %s237 = smul.u32 16, %s14
      $region44: #{_value_forward.1} parent=39 // pred_fallthru
        _
    $region40: #{_value_forward.1} parent=5 // pred_fallthru
      _
    %p238 = scmp.le.s32.totalorder 1, %s14
    %p239 = scmp.lt.s32.totalorder %s14, 3
    %p240 = pnand %p238, %p239
    %p241 = pneg %p240
    // Predicated region
    $region45: #{_value_forward.1} parent=5 // pred_check
      _
    $region46: #{_value_forward.1} parent=5 // pred_check_branch
      %243 = sbr.rel (%p240) target = $region48
    $region47: #{_value_forward.1} parent=5 // pred_region
      %s244 = ssub.s32 %s14, 1
      %s245 = smul.u32 16, %s19
      %p246 = scmp.lt.s32.totalorder %s245, 31
      %s247 = scalar_select %p246, %s245, 31
      %s248 = smul.addr %s247, 8
      %s249 = scalar_lea.vmem %s0, %s248
      %p250 = pneg %p40
      %p251 = pneg %p37
      %p252 = pneg %p61
      %p253 = pneg %p58
      %p254 = pneg %p82
      %p255 = pneg %p79
      %p256 = pneg %p103
      %p257 = pneg %p100
      %p258 = pneg %p124
      %p259 = pneg %p121
      %p260 = pneg %p145
      %p261 = pneg %p142
      %p262 = pneg %p166
      %p263 = pneg %p163
      %p264 = pneg %p192
      %p265 = pneg %p189
      %p266 = scmp.lt.s32.totalorder %s19, 1
      %s267 = scalar_select %p266, %s19, 1
      %s268 = scalar_lea.vmem %s7, %s267
      %s269 = smul.u32 16, %s19
      %p270 = scmp.lt.s32.totalorder %s269, 31
      %s271 = scalar_select %p270, %s269, 31
      %s272 = smul.addr %s271, 8
      %s273 = scalar_lea.vmem %s0, %s272
      %s274 = smul.u32 16, %s19
      %p275 = scmp.lt.s32.totalorder %s19, 1
      %s276 = scalar_select %p275, %s19, 1
      %s277 = scalar_lea.vmem %s7, %s276
      %v279 = vld [vmem:[%s2] sm:$0xff]
      %v280 = vld [vmem:[%s2 + $0x8] sm:$0xff]
      %v281 = vld [vmem:[%s2 + $0x10] sm:$0xff]
      %v282 = vld [vmem:[%s2 + $0x18] sm:$0xff]
      %v283 = vld [vmem:[%s2 + $0x20] sm:$0xff]
      %v284 = vld [vmem:[%s2 + $0x28] sm:$0xff]
      %v285 = vld [vmem:[%s2 + $0x30] sm:$0xff]
      %v286 = vld [vmem:[%s2 + $0x38] sm:$0xff]
      %v287 = vpack.c.bf16 %v279, %v279
      %v288 = vpack.c.bf16 %v280, %v280
      %v289 = vpack.c.bf16 %v281, %v281
      %v290 = vpack.c.bf16 %v282, %v282
      %v291 = vpack.c.bf16 %v283, %v283
      %v292 = vpack.c.bf16 %v284, %v284
      %v293 = vpack.c.bf16 %v285, %v285
      %v294 = vpack.c.bf16 %v286, %v286
      %v295 = vld [vmem:[%s4] sm:$0xff]
      %v296 = vld [vmem:[%s4 + $0x8] sm:$0xff]
      %v297 = vld [vmem:[%s4 + $0x10] sm:$0xff]
      %v298 = vld [vmem:[%s4 + $0x18] sm:$0xff]
      %v299 = vld [vmem:[%s4 + $0x20] sm:$0xff]
      %v300 = vld [vmem:[%s4 + $0x28] sm:$0xff]
      %v301 = vld [vmem:[%s4 + $0x30] sm:$0xff]
      %v302 = vld [vmem:[%s4 + $0x38] sm:$0xff]
      %v303 = vpack.c.bf16 %v295, %v295
      %v304 = vpack.c.bf16 %v296, %v296
      %v305 = vpack.c.bf16 %v297, %v297
      %v306 = vpack.c.bf16 %v298, %v298
      %v307 = vpack.c.bf16 %v299, %v299
      %v308 = vpack.c.bf16 %v300, %v300
      %v309 = vpack.c.bf16 %v301, %v301
      %v310 = vpack.c.bf16 %v302, %v302
      %v311 = vld [vmem:[%s5] sm:$0xff]
      %v312 = vld [vmem:[%s5 + $0x8] sm:$0xff]
      %v313 = vld [vmem:[%s5 + $0x10] sm:$0xff]
      %v314 = vld [vmem:[%s5 + $0x18] sm:$0xff]
      %v315 = vld [vmem:[%s5 + $0x20] sm:$0xff]
      %v316 = vld [vmem:[%s5 + $0x28] sm:$0xff]
      %v317 = vld [vmem:[%s5 + $0x30] sm:$0xff]
      %v318 = vld [vmem:[%s5 + $0x38] sm:$0xff]
      %s319 = sld [smem:[#allocation2]]
      %v320 = vld [vmem:[%s273] sm:$0xff]
      %v321 = vld [vmem:[%s273 + $0x8] sm:$0xff]
      %v322 = vld [vmem:[%s273 + $0x10] sm:$0xff]
      %v323 = vld [vmem:[%s273 + $0x18] sm:$0xff]
      %v324 = vld [vmem:[%s273 + $0x20] sm:$0xff]
      %v325 = vld [vmem:[%s273 + $0x28] sm:$0xff]
      %v326 = vld [vmem:[%s273 + $0x30] sm:$0xff]
      %v327 = vld [vmem:[%s273 + $0x38] sm:$0xff]
      %v328 = vld [vmem:[%s273 + $0x40] sm:$0xff]
      %v329 = vld [vmem:[%s273 + $0x48] sm:$0xff]
      %v330 = vld [vmem:[%s273 + $0x50] sm:$0xff]
      %v331 = vld [vmem:[%s273 + $0x58] sm:$0xff]
      %v332 = vld [vmem:[%s273 + $0x60] sm:$0xff]
      %v333 = vld [vmem:[%s273 + $0x68] sm:$0xff]
      %v334 = vld [vmem:[%s273 + $0x70] sm:$0xff]
      %v335 = vld [vmem:[%s273 + $0x78] sm:$0xff]
      %v336 = vpack.c.bf16 %v321, %v320
      %v337 = vpack.c.bf16 %v323, %v322
      %v338 = vpack.c.bf16 %v325, %v324
      %v339 = vpack.c.bf16 %v327, %v326
      %v340 = vpack.c.bf16 %v329, %v328
      %v341 = vpack.c.bf16 %v331, %v330
      %v342 = vpack.c.bf16 %v333, %v332
      %v343 = vpack.c.bf16 %v335, %v334
      %v344 = vld [vmem:[%s1] sm:$0xf]
      %v345 = vld [vmem:[%s1 + $0x4] sm:$0xf]
      %v346 = vld [vmem:[%s1 + $0x8] sm:$0xf]
      %v347 = vld [vmem:[%s1 + $0xc] sm:$0xf]
      %v348 = vld [vmem:[%s1 + $0x10] sm:$0xf]
      %v349 = vld [vmem:[%s1 + $0x14] sm:$0xf]
      %v350 = vld [vmem:[%s1 + $0x18] sm:$0xf]
      %v351 = vld [vmem:[%s1 + $0x1c] sm:$0xf]
      %v360 = vunpack.c.l.b16 %v344
      %v361 = vunpack.c.l.b16 %v345
      %v362 = vunpack.c.l.b16 %v346
      %v363 = vunpack.c.l.b16 %v347
      %v364 = vunpack.c.l.b16 %v348
      %v365 = vunpack.c.l.b16 %v349
      %v366 = vunpack.c.l.b16 %v350
      %v367 = vunpack.c.l.b16 %v351
      %v368 = vpack.c.b16 %v361, %v360
      %v369 = vpack.c.b16 %v363, %v362
      %v370 = vpack.c.b16 %v365, %v364
      %v371 = vpack.c.b16 %v367, %v366
      %vm372 = vcmask 261120
      %v374 = vsel %vm372, %v368, 0
      %v377 = vsel %vm372, %v369, 0
      %v380 = vsel %vm372, %v370, 0
      %v383 = vsel %vm372, %v371, 0
      %v386 = vsel %vm372, %v336, 0
      %v389 = vsel %vm372, %v337, 0
      %v392 = vsel %vm372, %v338, 0
      %v395 = vsel %vm372, %v339, 0
      %v398 = vsel %vm372, %v340, 0
      %v401 = vsel %vm372, %v341, 0
      %v404 = vsel %vm372, %v342, 0
      %v407 = vsel %vm372, %v343, 0
      %409 = vmatpush.bf16.xpose.msra.mxu0 %v407
      %410 = vmatpush.bf16.xpose.msra.mxu0 %v404
      %411 = vmatpush.bf16.xpose.msra.mxu0 %v401
      %412 = vmatpush.bf16.xpose.msra.mxu0 %v398
      %413 = vmatpush.bf16.xpose.msra.mxu0 %v395
      %414 = vmatpush.bf16.xpose.msra.mxu0 %v392
      %415 = vmatpush.bf16.xpose.msra.mxu0 %v389
      %416 = vmatpush.bf16.xpose.msra.mxu0 %v386
      %417 = vmatmul.bf16.gmra.mxu0 %v374
      %v418 = vpop.f32.mrf.mxu0
      %v419 = vadd.f32 0.0, %v418
      %v420 = vpop.f32.mrf.mxu0
      %v421 = vadd.f32 0.0, %v420
      %422 = vmatmul.bf16.gmra.mxu0 %v377
      %v423 = vpop.f32.mrf.mxu0
      %v424 = vadd.f32 0.0, %v423
      %v425 = vpop.f32.mrf.mxu0
      %v426 = vadd.f32 0.0, %v425
      %427 = vmatmul.bf16.gmra.mxu0 %v380
      %v428 = vpop.f32.mrf.mxu0
      %v429 = vadd.f32 0.0, %v428
      %v430 = vpop.f32.mrf.mxu0
      %v431 = vadd.f32 0.0, %v430
      %432 = vmatmul.bf16.gmra.mxu0 %v383
      %v433 = vpop.f32.mrf.mxu0
      %v434 = vadd.f32 0.0, %v433
      %v435 = vpop.f32.mrf.mxu0
      %v436 = vadd.f32 0.0, %v435
      %437 = vdwg.mxu0
      %v438 = vpack.c.bf16 %v419, %v419
      %v439 = vpack.c.bf16 %v421, %v421
      %v440 = vpack.c.bf16 %v424, %v424
      %v441 = vpack.c.bf16 %v426, %v426
      %v442 = vpack.c.bf16 %v429, %v429
      %v443 = vpack.c.bf16 %v431, %v431
      %v444 = vpack.c.bf16 %v434, %v434
      %v445 = vpack.c.bf16 %v436, %v436
      %447 = vset.pattern.permute.xlu0 0
      %448 = vperm.xlu0 %447, %v287
      %v449 = vpop.permute.xlu0 %448
      %v452 = vunpack.c.l.s4 839922192
      %v453 = vunpack.c.0.s8 %v452
      %v454 = vperm.slane %v449, %v453
      %456 = vset.pattern.permute.xlu0 0
      %457 = vperm.xlu0 %456, %v288
      %v458 = vpop.permute.xlu0 %457
      %v461 = vunpack.c.l.s4 839922192
      %v462 = vunpack.c.0.s8 %v461
      %v463 = vperm.slane %v458, %v462
      %465 = vset.pattern.permute.xlu0 0
      %466 = vperm.xlu0 %465, %v289
      %v467 = vpop.permute.xlu0 %466
      %v470 = vunpack.c.l.s4 839922192
      %v471 = vunpack.c.0.s8 %v470
      %v472 = vperm.slane %v467, %v471
      %474 = vset.pattern.permute.xlu0 0
      %475 = vperm.xlu0 %474, %v290
      %v476 = vpop.permute.xlu0 %475
      %v479 = vunpack.c.l.s4 839922192
      %v480 = vunpack.c.0.s8 %v479
      %v481 = vperm.slane %v476, %v480
      %483 = vset.pattern.permute.xlu0 0
      %484 = vperm.xlu0 %483, %v291
      %v485 = vpop.permute.xlu0 %484
      %v488 = vunpack.c.l.s4 839922192
      %v489 = vunpack.c.0.s8 %v488
      %v490 = vperm.slane %v485, %v489
      %492 = vset.pattern.permute.xlu0 0
      %493 = vperm.xlu0 %492, %v292
      %v494 = vpop.permute.xlu0 %493
      %v497 = vunpack.c.l.s4 839922192
      %v498 = vunpack.c.0.s8 %v497
      %v499 = vperm.slane %v494, %v498
      %501 = vset.pattern.permute.xlu0 0
      %502 = vperm.xlu0 %501, %v293
      %v503 = vpop.permute.xlu0 %502
      %v506 = vunpack.c.l.s4 839922192
      %v507 = vunpack.c.0.s8 %v506
      %v508 = vperm.slane %v503, %v507
      %510 = vset.pattern.permute.xlu0 0
      %511 = vperm.xlu0 %510, %v294
      %v512 = vpop.permute.xlu0 %511
      %v515 = vunpack.c.l.s4 839922192
      %v516 = vunpack.c.0.s8 %v515
      %v517 = vperm.slane %v512, %v516
      %v518 = vunpack.c.l.bf16 %v438
      %v519 = vunpack.c.l.bf16 %v439
      %v520 = vunpack.c.l.bf16 %v440
      %v521 = vunpack.c.l.bf16 %v441
      %v522 = vunpack.c.l.bf16 %v442
      %v523 = vunpack.c.l.bf16 %v443
      %v524 = vunpack.c.l.bf16 %v444
      %v525 = vunpack.c.l.bf16 %v445
      %v526 = vunpack.c.l.bf16 %v454
      %v527 = vunpack.c.l.bf16 %v463
      %v528 = vunpack.c.l.bf16 %v472
      %v529 = vunpack.c.l.bf16 %v481
      %v530 = vunpack.c.l.bf16 %v490
      %v531 = vunpack.c.l.bf16 %v499
      %v532 = vunpack.c.l.bf16 %v508
      %v533 = vunpack.c.l.bf16 %v517
      %v534 = vadd.f32 %v518, %v526
      %v535 = vadd.f32 %v519, %v527
      %v536 = vadd.f32 %v520, %v528
      %v537 = vadd.f32 %v521, %v529
      %v538 = vadd.f32 %v522, %v530
      %v539 = vadd.f32 %v523, %v531
      %v540 = vadd.f32 %v524, %v532
      %v541 = vadd.f32 %v525, %v533
      %v542 = vpack.c.bf16 %v535, %v534
      %v543 = vpack.c.bf16 %v537, %v536
      %v544 = vpack.c.bf16 %v539, %v538
      %v545 = vpack.c.bf16 %v541, %v540
      %v546 = vunpack.c.l.bf16 %v542
      %v547 = vunpack.c.h.bf16 %v542
      %v548 = vunpack.c.l.bf16 %v543
      %v549 = vunpack.c.h.bf16 %v543
      %v550 = vunpack.c.l.bf16 %v544
      %v551 = vunpack.c.h.bf16 %v544
      %v552 = vunpack.c.l.bf16 %v545
      %v553 = vunpack.c.h.bf16 %v545
      %v554 = vtanh.pop %v546
      %v555 = vtanh.pop %v547
      %v556 = vtanh.pop %v548
      %v557 = vtanh.pop %v549
      %v558 = vtanh.pop %v550
      %v559 = vtanh.pop %v551
      %v560 = vtanh.pop %v552
      %v561 = vtanh.pop %v553
      %v562 = vpack.c.bf16 %v555, %v554
      %v563 = vpack.c.bf16 %v557, %v556
      %v564 = vpack.c.bf16 %v559, %v558
      %v565 = vpack.c.bf16 %v561, %v560
      %v566 = vld [vmem:[%s3] sm:$0xf]
      %v567 = vld [vmem:[%s3 + $0x4] sm:$0xf]
      %v568 = vld [vmem:[%s3 + $0x8] sm:$0xf]
      %v569 = vld [vmem:[%s3 + $0xc] sm:$0xf]
      %v570 = vld [vmem:[%s3 + $0x10] sm:$0xf]
      %v571 = vld [vmem:[%s3 + $0x14] sm:$0xf]
      %v572 = vld [vmem:[%s3 + $0x18] sm:$0xf]
      %v573 = vld [vmem:[%s3 + $0x1c] sm:$0xf]
      %v582 = vunpack.c.l.b16 %v566
      %v583 = vunpack.c.l.b16 %v567
      %v584 = vunpack.c.l.b16 %v568
      %v585 = vunpack.c.l.b16 %v569
      %v586 = vunpack.c.l.b16 %v570
      %v587 = vunpack.c.l.b16 %v571
      %v588 = vunpack.c.l.b16 %v572
      %v589 = vunpack.c.l.b16 %v573
      %v590 = vpack.c.b16 %v583, %v582
      %v591 = vpack.c.b16 %v585, %v584
      %v592 = vpack.c.b16 %v587, %v586
      %v593 = vpack.c.b16 %v589, %v588
      %vm594 = vcmask 523264
      %v596 = vsel %vm594, %v590, 0
      %v599 = vsel %vm594, %v591, 0
      %v602 = vsel %vm594, %v592, 0
      %v605 = vsel %vm594, %v593, 0
      %607 = vmatpush.bf16.msra.mxu0 0
      %608 = vmatpush.bf16.msra.mxu0 0
      %609 = vmatpush.bf16.msra.mxu0 0
      %610 = vmatpush.bf16.msra.mxu0 0
      %611 = vmatpush.bf16.msra.mxu0 %v565
      %612 = vmatpush.bf16.msra.mxu0 %v564
      %613 = vmatpush.bf16.msra.mxu0 %v563
      %614 = vmatpush.bf16.msra.mxu0 %v562
      %615 = vmatmul.bf16.gmra.mxu0 %v596
      %v616 = vpop.f32.mrf.mxu0
      %v617 = vadd.f32 0.0, %v616
      %v618 = vpop.f32.mrf.mxu0
      %v619 = vadd.f32 0.0, %v618
      %620 = vmatmul.bf16.gmra.mxu0 %v599
      %v621 = vpop.f32.mrf.mxu0
      %v622 = vadd.f32 0.0, %v621
      %v623 = vpop.f32.mrf.mxu0
      %v624 = vadd.f32 0.0, %v623
      %625 = vmatmul.bf16.gmra.mxu0 %v602
      %v626 = vpop.f32.mrf.mxu0
      %v627 = vadd.f32 0.0, %v626
      %v628 = vpop.f32.mrf.mxu0
      %v629 = vadd.f32 0.0, %v628
      %630 = vmatmul.bf16.gmra.mxu0 %v605
      %v631 = vpop.f32.mrf.mxu0
      %v632 = vadd.f32 0.0, %v631
      %v633 = vpop.f32.mrf.mxu0
      %v634 = vadd.f32 0.0, %v633
      %635 = vdwg.mxu0
      %v636 = vpack.c.bf16 %v617, %v617
      %v637 = vpack.c.bf16 %v619, %v619
      %v638 = vpack.c.bf16 %v622, %v622
      %v639 = vpack.c.bf16 %v624, %v624
      %v640 = vpack.c.bf16 %v627, %v627
      %v641 = vpack.c.bf16 %v629, %v629
      %v642 = vpack.c.bf16 %v632, %v632
      %v643 = vpack.c.bf16 %v634, %v634
      %645 = vset.pattern.permute.xlu0 0
      %646 = vperm.xlu0 %645, %v303
      %v647 = vpop.permute.xlu0 %646
      %v650 = vunpack.c.l.s4 839922192
      %v651 = vunpack.c.0.s8 %v650
      %v652 = vperm.slane %v647, %v651
      %654 = vset.pattern.permute.xlu0 0
      %655 = vperm.xlu0 %654, %v304
      %v656 = vpop.permute.xlu0 %655
      %v659 = vunpack.c.l.s4 839922192
      %v660 = vunpack.c.0.s8 %v659
      %v661 = vperm.slane %v656, %v660
      %663 = vset.pattern.permute.xlu0 0
      %664 = vperm.xlu0 %663, %v305
      %v665 = vpop.permute.xlu0 %664
      %v668 = vunpack.c.l.s4 839922192
      %v669 = vunpack.c.0.s8 %v668
      %v670 = vperm.slane %v665, %v669
      %672 = vset.pattern.permute.xlu0 0
      %673 = vperm.xlu0 %672, %v306
      %v674 = vpop.permute.xlu0 %673
      %v677 = vunpack.c.l.s4 839922192
      %v678 = vunpack.c.0.s8 %v677
      %v679 = vperm.slane %v674, %v678
      %681 = vset.pattern.permute.xlu0 0
      %682 = vperm.xlu0 %681, %v307
      %v683 = vpop.permute.xlu0 %682
      %v686 = vunpack.c.l.s4 839922192
      %v687 = vunpack.c.0.s8 %v686
      %v688 = vperm.slane %v683, %v687
      %690 = vset.pattern.permute.xlu0 0
      %691 = vperm.xlu0 %690, %v308
      %v692 = vpop.permute.xlu0 %691
      %v695 = vunpack.c.l.s4 839922192
      %v696 = vunpack.c.0.s8 %v695
      %v697 = vperm.slane %v692, %v696
      %699 = vset.pattern.permute.xlu0 0
      %700 = vperm.xlu0 %699, %v309
      %v701 = vpop.permute.xlu0 %700
      %v704 = vunpack.c.l.s4 839922192
      %v705 = vunpack.c.0.s8 %v704
      %v706 = vperm.slane %v701, %v705
      %708 = vset.pattern.permute.xlu0 0
      %709 = vperm.xlu0 %708, %v310
      %v710 = vpop.permute.xlu0 %709
      %v713 = vunpack.c.l.s4 839922192
      %v714 = vunpack.c.0.s8 %v713
      %v715 = vperm.slane %v710, %v714
      %v716 = vunpack.c.l.bf16 %v636
      %v717 = vunpack.c.l.bf16 %v637
      %v718 = vunpack.c.l.bf16 %v638
      %v719 = vunpack.c.l.bf16 %v639
      %v720 = vunpack.c.l.bf16 %v640
      %v721 = vunpack.c.l.bf16 %v641
      %v722 = vunpack.c.l.bf16 %v642
      %v723 = vunpack.c.l.bf16 %v643
      %v724 = vunpack.c.l.bf16 %v652
      %v725 = vunpack.c.l.bf16 %v661
      %v726 = vunpack.c.l.bf16 %v670
      %v727 = vunpack.c.l.bf16 %v679
      %v728 = vunpack.c.l.bf16 %v688
      %v729 = vunpack.c.l.bf16 %v697
      %v730 = vunpack.c.l.bf16 %v706
      %v731 = vunpack.c.l.bf16 %v715
      %v732 = vadd.f32 %v716, %v724
      %v733 = vadd.f32 %v717, %v725
      %v734 = vadd.f32 %v718, %v726
      %v735 = vadd.f32 %v719, %v727
      %v736 = vadd.f32 %v720, %v728
      %v737 = vadd.f32 %v721, %v729
      %v738 = vadd.f32 %v722, %v730
      %v739 = vadd.f32 %v723, %v731
      %v740 = vpack.c.bf16 %v732, %v732
      %v741 = vpack.c.bf16 %v733, %v733
      %v742 = vpack.c.bf16 %v734, %v734
      %v743 = vpack.c.bf16 %v735, %v735
      %v744 = vpack.c.bf16 %v736, %v736
      %v745 = vpack.c.bf16 %v737, %v737
      %v746 = vpack.c.bf16 %v738, %v738
      %v747 = vpack.c.bf16 %v739, %v739
      %v748 = vunpack.c.l.bf16 %v740
      %v749 = vunpack.c.l.bf16 %v741
      %v750 = vunpack.c.l.bf16 %v742
      %v751 = vunpack.c.l.bf16 %v743
      %v752 = vunpack.c.l.bf16 %v744
      %v753 = vunpack.c.l.bf16 %v745
      %v754 = vunpack.c.l.bf16 %v746
      %v755 = vunpack.c.l.bf16 %v747
      %v756 = vtanh.pop %v748
      %v757 = vtanh.pop %v749
      %v758 = vtanh.pop %v750
      %v759 = vtanh.pop %v751
      %v760 = vtanh.pop %v752
      %v761 = vtanh.pop %v753
      %v762 = vtanh.pop %v754
      %v763 = vtanh.pop %v755
      %v764 = vpack.c.bf16 %v756, %v756
      %v765 = vpack.c.bf16 %v757, %v757
      %v766 = vpack.c.bf16 %v758, %v758
      %v767 = vpack.c.bf16 %v759, %v759
      %v768 = vpack.c.bf16 %v760, %v760
      %v769 = vpack.c.bf16 %v761, %v761
      %v770 = vpack.c.bf16 %v762, %v762
      %v771 = vpack.c.bf16 %v763, %v763
      %v772 = vunpack.c.l.bf16 %v764
      %v773 = vunpack.c.l.bf16 %v765
      %v774 = vunpack.c.l.bf16 %v766
      %v775 = vunpack.c.l.bf16 %v767
      %v776 = vunpack.c.l.bf16 %v768
      %v777 = vunpack.c.l.bf16 %v769
      %v778 = vunpack.c.l.bf16 %v770
      %v779 = vunpack.c.l.bf16 %v771
      %781 = vset.pattern.permute.xlu0 0
      %782 = vperm.xlu0 %781, %v311
      %v783 = vpop.permute.xlu0 %782
      %786 = vset.pattern.permute.xlu0 0
      %787 = vperm.xlu0 %786, %v312
      %v788 = vpop.permute.xlu0 %787
      %791 = vset.pattern.permute.xlu0 0
      %792 = vperm.xlu0 %791, %v313
      %v793 = vpop.permute.xlu0 %792
      %796 = vset.pattern.permute.xlu0 0
      %797 = vperm.xlu0 %796, %v314
      %v798 = vpop.permute.xlu0 %797
      %801 = vset.pattern.permute.xlu0 0
      %802 = vperm.xlu0 %801, %v315
      %v803 = vpop.permute.xlu0 %802
      %806 = vset.pattern.permute.xlu0 0
      %807 = vperm.xlu0 %806, %v316
      %v808 = vpop.permute.xlu0 %807
      %811 = vset.pattern.permute.xlu0 0
      %812 = vperm.xlu0 %811, %v317
      %v813 = vpop.permute.xlu0 %812
      %816 = vset.pattern.permute.xlu0 0
      %817 = vperm.xlu0 %816, %v318
      %v818 = vpop.permute.xlu0 %817
      %v820 = vmul.f32 %v772, %v783
      %v821 = vmul.f32 %v773, %v788
      %v822 = vmul.f32 %v774, %v793
      %v823 = vmul.f32 %v775, %v798
      %v824 = vmul.f32 %v776, %v803
      %v825 = vmul.f32 %v777, %v808
      %v826 = vmul.f32 %v778, %v813
      %v827 = vmul.f32 %v779, %v818
      %v828 = vadd.f32 %v820, %v821
      %v829 = vadd.f32 %v828, %v822
      %v830 = vadd.f32 %v829, %v823
      %v831 = vadd.f32 %v830, %v824
      %v832 = vadd.f32 %v831, %v825
      %v833 = vadd.f32 %v832, %v826
      %v834 = vadd.f32 %v833, %v827
      %v835 = vrot.slane %v834, 4
      %v836 = vadd.f32 %v834, %v835
      %v837 = vrot.slane %v836, 2
      %v838 = vadd.f32 %v836, %v837
      %v839 = vrot.slane %v838, 1
      %v840 = vadd.f32 %v838, %v839
      %v841 = vstv %s319
      %v842 = vadd.f32 %v840, %v841
      %843 = vst [vmem:[%s277] sm:$0x1] %v842
      %p844 = scmp.lt.s32.totalorder %s19, 1
      %s845 = scalar_select %p844, %s19, 1
      %s846 = scalar_lea.vmem %s7, %s845
      // Predicated region
      $region49: #{_value_forward.1} parent=47 // pred_check
        %p847 = pneg %p189
      $region50: #{_value_forward.1} parent=47 // pred_check_branch
        %849 = sbr.rel (%p847) target = $region52
      $region51: #{_value_forward.1} parent=47 // pred_region
        _
      $region52: #{_value_forward.1} parent=47 // pred_fallthru
        _
    $region48: #{_value_forward.1} parent=5 // pred_fallthru
      _
    %p850 = scmp.le.s32.totalorder 2, %s14
    // Predicated region
    $region53: #{_value_forward.1} parent=5 // pred_check
      %p851 = pneg %p850
    $region54: #{_value_forward.1} parent=5 // pred_check_branch
      %853 = sbr.rel (%p851) target = $region56
    $region55: #{_value_forward.1} parent=5 // pred_region
      %s854 = ssub.s32 %s14, 2
      // Predicated region
      $region57: #{_value_forward.1} parent=55 // pred_check
        %p855 = pneg %p195
      $region58: #{_value_forward.1} parent=55 // pred_check_branch
        %857 = sbr.rel (%p855) target = $region60
      $region59: #{_value_forward.1} parent=55 // pred_region
        %p858 = scmp.lt.s32.totalorder %s20, 1
        %s859 = scalar_select %p858, %s20, 1
        %s860 = scalar_lea.vmem %s7, %s859
      $region60: #{_value_forward.1} parent=55 // pred_fallthru
        _
    $region56: #{_value_forward.1} parent=5 // pred_fallthru
      _
  $region6: #{_value_forward.1} parent=0 // loop_footer
    %s18 = sadd.s32 1, %s14
  $region7: #{_value_forward.1} parent=0 // loop_footer_branch
    %13 = sbr.rel target = $region3
  $region8: #{_value_forward.1} parent=0 // loop_exit
    _

</llo_original>
